<compile_context>
chip_gen: v6e
topology: v6e:2x2x1
jax: 0.10.0
libtpu: 0.0.40
codegen_flags: <defaults>
</compile_context>

<pallas_src>
import functools

import numpy as np
import jax
import jax.numpy as jnp
from jax.experimental import pallas as pl
from jax.experimental.pallas import tpu as pltpu


def _round_up(x, m):
    return (x + m - 1) // m * m


def mfb_kernel(x0_ref, x1_ref, w0_ref, b0_ref, w1_ref, b1_ref,
               wout_ref, bout_ref, o_ref, *, factor, slab):
    """One (row-tile i, hidden-tile j) grid step.

    grid axis 0: independent row (batch) tiles      -> "parallel"
    grid axis 1: hidden (mm) reduction tiles        -> "arbitrary"

    Hidden columns are pre-permuted so tile j holds `factor` contiguous slabs
    (each `slab` lanes, a multiple of 128) over the same mm indices; the
    factor-sum is lane-aligned VPU adds and the output projection uses the
    un-repeated Wout slice (slab, Opad).
    """
    f32 = jnp.float32
    j = pl.program_id(1)
    th = factor * slab

    # Fully resident biases; slice this tile's lane-aligned window.
    col = pl.multiple_of(j * th, 128)
    b0 = b0_ref[:, pl.ds(col, th)]
    b1 = b1_ref[:, pl.ds(col, th)]

    # linear0 / linear1 restricted to this hidden slice, + ReLU (activ_input)
    y0 = jnp.maximum(
        jnp.dot(x0_ref[...], w0_ref[...], preferred_element_type=f32) + b0, 0.0)
    y1 = jnp.maximum(
        jnp.dot(x1_ref[...], w1_ref[...], preferred_element_type=f32) + b1, 0.0)

    # Hadamard product, then factor-sum in f32 over contiguous slabs (VPU adds).
    z = y0 * y1                                     # (tm, th) f32
    zr = z[:, :slab]
    for f in range(1, factor):
        zr = zr + z[:, f * slab:(f + 1) * slab]     # lane-aligned, 128-multiple
    zr = zr.astype(wout_ref.dtype)

    partial = jnp.dot(zr, wout_ref[...], preferred_element_type=f32)

    # Accumulate directly into the f32, VMEM-resident output block.
    @pl.when(j == 0)
    def _first():
        o_ref[...] = partial

    @pl.when(j != 0)
    def _rest():
        o_ref[...] += partial

    @pl.when(j == pl.num_programs(1) - 1)
    def _finalize():
        # linear_out bias + ReLU (activ_output); dropout p=0.0 -> no-op
        o_ref[...] = jnp.maximum(o_ref[...] + bout_ref[...], 0.0)


def prepare_mfb_params(w0, b0, w1, b1, w_out, b_out, *, mm_dim, factor,
                       activ_input='relu', activ_output='relu', normalize=False,
                       dropout_input=0.0, dropout_pre_norm=0.0, dropout_output=0.0,
                       compute_dtype=jnp.bfloat16, slab=None):
    """One-time parameter prep (hoisted out of the per-call path)."""
    # Only the module's default configuration is implemented.
    assert activ_input == 'relu' and activ_output == 'relu', "only relu implemented"
    assert not normalize, "normalize=True (signed sqrt + L2 norm) not implemented"
    assert dropout_input == 0.0 and dropout_pre_norm == 0.0 and dropout_output == 0.0

    f32 = jnp.float32
    H = mm_dim * factor
    assert w0.shape[0] == H and w1.shape[0] == H and w_out.shape[1] == mm_dim
    D0, D1, O = w0.shape[1], w1.shape[1], w_out.shape[0]

    # slab = per-tile mm width; keep th = slab*factor around <= 512 lanes.
    if slab is None:
        slab = max(128, (512 // factor) // 128 * 128)
    slab = max(128, (slab // 128) * 128)
    slab = min(slab, _round_up(mm_dim, 128))
    th = slab * factor

    mm_pad = _round_up(mm_dim, slab)
    Hperm = mm_pad * factor
    Opad = _round_up(max(O, 128), 128)

    # Permutation: tile t, slab f, lane s  ->  original hidden column
    # (t*slab + s) * factor + f   (original layout: h = m*factor + f).
    t = np.arange(mm_pad // slab, dtype=np.int32)[:, None, None]
    f = np.arange(factor, dtype=np.int32)[None, :, None]
    s = np.arange(slab, dtype=np.int32)[None, None, :]
    perm = ((t * slab + s) * factor + f).reshape(-1).astype(np.int32)   # (Hperm,)

    def perm_cols(wT):                                   # wT: (in_dim, H)
        wT = jnp.pad(wT, ((0, 0), (0, Hperm - H)))       # padded mm cols are zero
        return jnp.take(wT, perm, axis=1)

    # Zero padding is exact: relu(0 + 0) = 0, padded Wout rows/cols are zero.
    w0p = perm_cols(w0.T).astype(compute_dtype)          # (D0, Hperm)
    w1p = perm_cols(w1.T).astype(compute_dtype)          # (D1, Hperm)
    b0p = jnp.take(jnp.pad(b0, (0, Hperm - H)), perm).reshape(1, Hperm).astype(f32)
    b1p = jnp.take(jnp.pad(b1, (0, Hperm - H)), perm).reshape(1, Hperm).astype(f32)

    woutp = jnp.pad(w_out.T, ((0, mm_pad - mm_dim), (0, Opad - O))).astype(compute_dtype)
    boutp = jnp.pad(b_out, (0, Opad - O)).reshape(1, Opad).astype(f32)

    return dict(w0=w0p, b0=b0p, w1=w1p, b1=b1p, wout=woutp, bout=boutp,
                factor=factor, slab=slab, th=th, mm_pad=mm_pad, Hperm=Hperm,
                Opad=Opad, D0=D0, D1=D1, O=O, compute_dtype=compute_dtype)


def mfb_forward(x0, x1, params, *, tm=None):
    """MFB fusion forward via one pipelined pallas_call on prepared params."""
    f32 = jnp.float32
    B = x0.shape[0]
    D0, D1, O = params['D0'], params['D1'], params['O']
    slab, factor, th = params['slab'], params['factor'], params['th']
    Hperm, Opad = params['Hperm'], params['Opad']
    comp = params['compute_dtype']
    assert x0.shape == (B, D0) and x1.shape == (B, D1)

    # Row-tile heuristic: keep >= 2 row tiles when the batch allows (megacore),
    # cap at 256 rows per tile.
    if tm is None:
        if B >= 512:
            tm = 256
        elif B >= 32:
            tm = _round_up((B + 1) // 2, 8)
        else:
            tm = _round_up(B, 8)
    Bpad = _round_up(B, tm)

    x0p = jnp.pad(x0, ((0, Bpad - B), (0, 0))).astype(comp)
    x1p = jnp.pad(x1, ((0, Bpad - B), (0, 0))).astype(comp)

    grid = (Bpad // tm, Hperm // th)

    # VMEM budget (double-buffered tiles + resident biases + f32 output block +
    # y0/y1/z temporaries), with headroom; clamp so it is valid on v7x (64 MiB).
    cb = jnp.dtype(comp).itemsize
    est = (2 * tm * (D0 + D1) * cb            # x0/x1 row tiles
           + 2 * (D0 + D1) * th * cb          # W0/W1 hidden slices
           + 2 * slab * Opad * cb             # Wout slice (un-repeated)
           + 2 * Hperm * 4 + Opad * 4         # resident biases
           + 2 * tm * Opad * 4                # f32 output / accumulator block
           + 3 * tm * th * 4)                 # y0 / y1 / z temporaries
    vmem_limit = int(min(max(int(est * 1.5), 16 * 1024 * 1024), 64 * 1024 * 1024))

    kernel = functools.partial(mfb_kernel, factor=factor, slab=slab)

    out = pl.pallas_call(
        kernel,
        out_shape=jax.ShapeDtypeStruct((Bpad, Opad), f32),
        grid_spec=pltpu.PrefetchScalarGridSpec(
            num_scalar_prefetch=0,
            grid=grid,
            in_specs=[
                pl.BlockSpec((tm, D0), lambda i, j: (i, 0)),      # x0 row tile (resident over j)
                pl.BlockSpec((tm, D1), lambda i, j: (i, 0)),      # x1 row tile
                pl.BlockSpec((D0, th), lambda i, j: (0, j)),      # W0^T hidden slice (permuted)
                pl.BlockSpec((1, Hperm), lambda i, j: (0, 0)),    # b0 fully resident
                pl.BlockSpec((D1, th), lambda i, j: (0, j)),      # W1^T hidden slice (permuted)
                pl.BlockSpec((1, Hperm), lambda i, j: (0, 0)),    # b1 fully resident
                pl.BlockSpec((slab, Opad), lambda i, j: (j, 0)),  # Wout slice (un-repeated)
                pl.BlockSpec((1, Opad), lambda i, j: (0, 0)),     # bout resident
            ],
            out_specs=pl.BlockSpec((tm, Opad), lambda i, j: (i, 0)),
        ),
        compiler_params=pltpu.CompilerParams(
            dimension_semantics=("parallel", "arbitrary"),
            vmem_limit_bytes=vmem_limit),
    )(x0p, x1p, params['w0'], params['b0'], params['w1'], params['b1'],
      params['wout'], params['bout'])

    if Bpad == B and Opad == O:
        return out
    return out[:B, :O]


def reference_mfb(x0, x1, w0, b0, w1, b1, w_out, b_out, mm_dim, factor):
    """Pure-JAX float32 reference mirroring the torch module (default config)."""
    y0 = jnp.maximum(x0 @ w0.T + b0, 0.0)
    y1 = jnp.maximum(x1 @ w1.T + b1, 0.0)
    z = (y0 * y1).reshape(x0.shape[0], mm_dim, factor).sum(axis=2)
    return jnp.maximum(z @ w_out.T + b_out, 0.0)


if __name__ == "__main__":
    # small, shape-consistent configuration
    B = 8            # batch
    D0, D1 = 32, 48  # input_dims
    MM = 256         # mm_dim
    FACTOR = 2       # factor
    OUT = 64         # output_dim
    H = MM * FACTOR

    root = jax.random.PRNGKey(0)
    ks = jax.random.split(root, 8)

    x0 = jax.random.normal(ks[0], (B, D0), jnp.float32)
    x1 = jax.random.normal(ks[1], (B, D1), jnp.float32)

    def linear_init(kw, kb, out_dim, in_dim):
        # nn.Linear default init: U(-1/sqrt(in_dim), 1/sqrt(in_dim))
        bound = 1.0 / jnp.sqrt(jnp.float32(in_dim))
        w = jax.random.uniform(kw, (out_dim, in_dim), jnp.float32, -bound, bound)
        b = jax.random.uniform(kb, (out_dim,), jnp.float32, -bound, bound)
        return w, b

    w0, b0 = linear_init(ks[2], ks[3], H, D0)
    w1, b1 = linear_init(ks[4], ks[5], H, D1)
    w_out, b_out = linear_init(ks[6], ks[7], OUT, MM)

    ref = reference_mfb(x0, x1, w0, b0, w1, b1, w_out, b_out, MM, FACTOR)

    # f32 path; slab=128 -> 2 hidden tiles so the multi-step accumulation
    # (store-first / += / finalize) path is exercised.
    p_f32 = prepare_mfb_params(w0, b0, w1, b1, w_out, b_out,
                               mm_dim=MM, factor=FACTOR,
                               compute_dtype=jnp.float32, slab=128)
    out_f32 = jax.block_until_ready(mfb_forward(x0, x1, p_f32))
    err_f32 = float(jnp.max(jnp.abs(out_f32 - ref)) / (jnp.max(jnp.abs(ref)) + 1e-6))
    assert out_f32.shape == (B, OUT), out_f32.shape
    assert err_f32 < 5e-3, f"f32 relative error too large: {err_f32}"

    # bf16 weights/activations with f32 MXU accumulation, default slab (1 tile).
    p_bf16 = prepare_mfb_params(w0, b0, w1, b1, w_out, b_out,
                                mm_dim=MM, factor=FACTOR,
                                compute_dtype=jnp.bfloat16)
    out_bf16 = jax.block_until_ready(mfb_forward(x0, x1, p_bf16))
    err_bf16 = float(jnp.max(jnp.abs(out_bf16 - ref)) / (jnp.max(jnp.abs(ref)) + 1e-6))
    assert out_bf16.shape == (B, OUT), out_bf16.shape
    assert err_bf16 < 3e-2, f"bf16 relative error too large: {err_bf16}"

    print("KERNEL_OK")
</pallas_src>

<mosaic_0001>
module attributes {stable_mosaic.version = 11 : i64} {
  func.func @mfb_kernel(%arg0: i32, %arg1: i32, %arg2: memref<8x32xf32, #tpu.memory_space<vmem>>, %arg3: memref<8x48xf32, #tpu.memory_space<vmem>>, %arg4: memref<32x256xf32, #tpu.memory_space<vmem>>, %arg5: memref<1x512xf32, #tpu.memory_space<vmem>>, %arg6: memref<48x256xf32, #tpu.memory_space<vmem>>, %arg7: memref<1x512xf32, #tpu.memory_space<vmem>>, %arg8: memref<128x128xf32, #tpu.memory_space<vmem>>, %arg9: memref<1x128xf32, #tpu.memory_space<vmem>>, %arg10: memref<8x128xf32, #tpu.memory_space<vmem>>) attributes {dimension_semantics = [#tpu.dimension_semantics<parallel>, #tpu.dimension_semantics<arbitrary>], iteration_bounds = array<i64: 1, 2>, scalar_prefetch = 0 : i64, scratch_operands = 0 : i64, tpu.core_type = #tpu.core_type<tc>, window_params = [{transform_indices = @transform_0, window_bounds = array<i64: 8, 32>}, {transform_indices = @transform_1, window_bounds = array<i64: 8, 48>}, {transform_indices = @transform_2, window_bounds = array<i64: 32, 256>}, {pipeline_mode = #tpu.pipeline_mode<synchronous>, transform_indices = @transform_3, window_bounds = array<i64: 1, 512>}, {transform_indices = @transform_4, window_bounds = array<i64: 48, 256>}, {pipeline_mode = #tpu.pipeline_mode<synchronous>, transform_indices = @transform_5, window_bounds = array<i64: 1, 512>}, {transform_indices = @transform_6, window_bounds = array<i64: 128, 128>}, {pipeline_mode = #tpu.pipeline_mode<synchronous>, transform_indices = @transform_7, window_bounds = array<i64: 1, 128>}, {transform_indices = @transform_8, window_bounds = array<i64: 8, 128>}]} {
    %c256_i32 = arith.constant 256 : i32
    %0 = arith.muli %arg1, %c256_i32 : i32
    %1 = tpu.assume_multiple %0, 128 : i32
    %c0 = arith.constant 0 : index
    %2 = arith.index_cast %1 : i32 to index
    %3 = vector.load %arg5[%c0, %2] : memref<1x512xf32, #tpu.memory_space<vmem>>, vector<1x256xf32>
    %c0_0 = arith.constant 0 : index
    %4 = arith.index_cast %1 : i32 to index
    %5 = vector.load %arg7[%c0_0, %4] : memref<1x512xf32, #tpu.memory_space<vmem>>, vector<1x256xf32>
    %c0_1 = arith.constant 0 : index
    %c0_2 = arith.constant 0 : index
    %6 = vector.load %arg2[%c0_1, %c0_2] : memref<8x32xf32, #tpu.memory_space<vmem>>, vector<8x32xf32>
    %c0_3 = arith.constant 0 : index
    %c0_4 = arith.constant 0 : index
    %7 = vector.load %arg4[%c0_3, %c0_4] : memref<32x256xf32, #tpu.memory_space<vmem>>, vector<32x256xf32>
    %cst = arith.constant dense<0.000000e+00> : vector<8x256xf32>
    %8 = tpu.matmul %6, %7, %cst {dimension_numbers = #tpu.dot_dimension_numbers<[1], [0], [0], [1], [0, 0, 1, 1], [], []>} : vector<8x32xf32>, vector<32x256xf32>, vector<8x256xf32> -> vector<8x256xf32>
    %9 = vector.broadcast %3 : vector<1x256xf32> to vector<8x256xf32>
    %10 = arith.addf %8, %9 : vector<8x256xf32>
    %cst_5 = arith.constant 0.000000e+00 : f32
    %11 = vector.broadcast %cst_5 : f32 to vector<8x256xf32>
    %12 = arith.maximumf %10, %11 : vector<8x256xf32>
    %c0_6 = arith.constant 0 : index
    %c0_7 = arith.constant 0 : index
    %13 = vector.load %arg3[%c0_6, %c0_7] : memref<8x48xf32, #tpu.memory_space<vmem>>, vector<8x48xf32>
    %c0_8 = arith.constant 0 : index
    %c0_9 = arith.constant 0 : index
    %14 = vector.load %arg6[%c0_8, %c0_9] : memref<48x256xf32, #tpu.memory_space<vmem>>, vector<48x256xf32>
    %cst_10 = arith.constant dense<0.000000e+00> : vector<8x256xf32>
    %15 = tpu.matmul %13, %14, %cst_10 {dimension_numbers = #tpu.dot_dimension_numbers<[1], [0], [0], [1], [0, 0, 1, 1], [], []>} : vector<8x48xf32>, vector<48x256xf32>, vector<8x256xf32> -> vector<8x256xf32>
    %16 = vector.broadcast %5 : vector<1x256xf32> to vector<8x256xf32>
    %17 = arith.addf %15, %16 : vector<8x256xf32>
    %cst_11 = arith.constant 0.000000e+00 : f32
    %18 = vector.broadcast %cst_11 : f32 to vector<8x256xf32>
    %19 = arith.maximumf %17, %18 : vector<8x256xf32>
    %20 = arith.mulf %12, %19 : vector<8x256xf32>
    %21 = vector.extract_strided_slice %20 {offsets = [0, 0], sizes = [8, 128], strides = [1, 1]} : vector<8x256xf32> to vector<8x128xf32>
    %22 = vector.extract_strided_slice %20 {offsets = [0, 128], sizes = [8, 128], strides = [1, 1]} : vector<8x256xf32> to vector<8x128xf32>
    %23 = arith.addf %21, %22 : vector<8x128xf32>
    %c0_12 = arith.constant 0 : index
    %c0_13 = arith.constant 0 : index
    %24 = vector.load %arg8[%c0_12, %c0_13] : memref<128x128xf32, #tpu.memory_space<vmem>>, vector<128x128xf32>
    %cst_14 = arith.constant dense<0.000000e+00> : vector<8x128xf32>
    %25 = tpu.matmul %23, %24, %cst_14 {dimension_numbers = #tpu.dot_dimension_numbers<[1], [0], [0], [1], [0, 0, 1, 1], [], []>} : vector<8x128xf32>, vector<128x128xf32>, vector<8x128xf32> -> vector<8x128xf32>
    %c0_i32 = arith.constant 0 : i32
    %26 = arith.cmpi eq, %arg1, %c0_i32 : i32
    %27 = arith.extui %26 : i1 to i32
    %c0_i32_15 = arith.constant 0 : i32
    %28 = arith.cmpi ne, %27, %c0_i32_15 : i32
    scf.if %28 {
      %c0_19 = arith.constant 0 : index
      %c0_20 = arith.constant 0 : index
      %35 = vector.load %arg10[%c0_19, %c0_20] : memref<8x128xf32, #tpu.memory_space<vmem>>, vector<8x128xf32>
      tpu.vector_store %arg10[%c0_19, %c0_20], %25 {strides = array<i32>} : memref<8x128xf32, #tpu.memory_space<vmem>>, vector<8x128xf32>,
    } else {
    }
    %c0_i32_16 = arith.constant 0 : i32
    %29 = arith.cmpi ne, %arg1, %c0_i32_16 : i32
    %30 = arith.extui %29 : i1 to i32
    %c0_i32_17 = arith.constant 0 : i32
    %31 = arith.cmpi ne, %30, %c0_i32_17 : i32
    scf.if %31 {
      %c0_19 = arith.constant 0 : index
      %c0_20 = arith.constant 0 : index
      %35 = vector.load %arg10[%c0_19, %c0_20] : memref<8x128xf32, #tpu.memory_space<vmem>>, vector<8x128xf32>
      %36 = arith.addf %35, %25 : vector<8x128xf32>
      %c0_21 = arith.constant 0 : index
      %c0_22 = arith.constant 0 : index
      %37 = vector.load %arg10[%c0_21, %c0_22] : memref<8x128xf32, #tpu.memory_space<vmem>>, vector<8x128xf32>
      tpu.vector_store %arg10[%c0_21, %c0_22], %36 {strides = array<i32>} : memref<8x128xf32, #tpu.memory_space<vmem>>, vector<8x128xf32>,
    } else {
    }
    %c1_i32 = arith.constant 1 : i32
    %32 = arith.cmpi eq, %arg1, %c1_i32 : i32
    %33 = arith.extui %32 : i1 to i32
    %c0_i32_18 = arith.constant 0 : i32
    %34 = arith.cmpi ne, %33, %c0_i32_18 : i32
    scf.if %34 {
      %c0_19 = arith.constant 0 : index
      %c0_20 = arith.constant 0 : index
      %35 = vector.load %arg10[%c0_19, %c0_20] : memref<8x128xf32, #tpu.memory_space<vmem>>, vector<8x128xf32>
      %c0_21 = arith.constant 0 : index
      %c0_22 = arith.constant 0 : index
      %36 = vector.load %arg9[%c0_21, %c0_22] : memref<1x128xf32, #tpu.memory_space<vmem>>, vector<1x128xf32>
      %37 = vector.broadcast %36 : vector<1x128xf32> to vector<8x128xf32>
      %38 = arith.addf %35, %37 : vector<8x128xf32>
      %cst_23 = arith.constant 0.000000e+00 : f32
      %39 = vector.broadcast %cst_23 : f32 to vector<8x128xf32>
      %40 = arith.maximumf %38, %39 : vector<8x128xf32>
      %c0_24 = arith.constant 0 : index
      %c0_25 = arith.constant 0 : index
      %41 = vector.load %arg10[%c0_24, %c0_25] : memref<8x128xf32, #tpu.memory_space<vmem>>, vector<8x128xf32>
      tpu.vector_store %arg10[%c0_24, %c0_25], %40 {strides = array<i32>} : memref<8x128xf32, #tpu.memory_space<vmem>>, vector<8x128xf32>,
    } else {
    }
    return
  }
  func.func @transform_0(%arg0: i32, %arg1: i32) -> (i32, i32) {
    %c0_i32 = arith.constant 0 : i32
    %c0_i32_0 = arith.constant 0 : i32
    return %arg0, %c0_i32 : i32, i32
  }
  func.func @transform_1(%arg0: i32, %arg1: i32) -> (i32, i32) {
    %c0_i32 = arith.constant 0 : i32
    %c0_i32_0 = arith.constant 0 : i32
    return %arg0, %c0_i32 : i32, i32
  }
  func.func @transform_2(%arg0: i32, %arg1: i32) -> (i32, i32) {
    %c0_i32 = arith.constant 0 : i32
    %c0_i32_0 = arith.constant 0 : i32
    return %c0_i32, %arg1 : i32, i32
  }
  func.func @transform_3(%arg0: i32, %arg1: i32) -> (i32, i32) {
    %c0_i32 = arith.constant 0 : i32
    %c0_i32_0 = arith.constant 0 : i32
    %c0_i32_1 = arith.constant 0 : i32
    return %c0_i32, %c0_i32_0 : i32, i32
  }
  func.func @transform_4(%arg0: i32, %arg1: i32) -> (i32, i32) {
    %c0_i32 = arith.constant 0 : i32
    %c0_i32_0 = arith.constant 0 : i32
    return %c0_i32, %arg1 : i32, i32
  }
  func.func @transform_5(%arg0: i32, %arg1: i32) -> (i32, i32) {
    %c0_i32 = arith.constant 0 : i32
    %c0_i32_0 = arith.constant 0 : i32
    %c0_i32_1 = arith.constant 0 : i32
    return %c0_i32, %c0_i32_0 : i32, i32
  }
  func.func @transform_6(%arg0: i32, %arg1: i32) -> (i32, i32) {
    %c0_i32 = arith.constant 0 : i32
    %c0_i32_0 = arith.constant 0 : i32
    return %arg1, %c0_i32 : i32, i32
  }
  func.func @transform_7(%arg0: i32, %arg1: i32) -> (i32, i32) {
    %c0_i32 = arith.constant 0 : i32
    %c0_i32_0 = arith.constant 0 : i32
    %c0_i32_1 = arith.constant 0 : i32
    return %c0_i32, %c0_i32_0 : i32, i32
  }
  func.func @transform_8(%arg0: i32, %arg1: i32) -> (i32, i32) {
    %c0_i32 = arith.constant 0 : i32
    %c0_i32_0 = arith.constant 0 : i32
    return %arg0, %c0_i32 : i32, i32
  }
}

</mosaic_0001>

<llo_original>
// kernel: tpu_custom_call.1
$region0: #{tpu_custom_call.1}
  #allocation0 [shape = 'u32[]', space=smem, size = 0x4, offset = 0x4, fixed_abs, tag = 'smem constant byte address 0x4 - core index']
  #allocation1 [shape = 'u32[144,128]{1,0:T(1,128)}', space=vmem, size = 0x12000, scoped, tag = 'internal scratch']
  %s0 = inlined_call_operand.hbm [shape: f32[8,32], index: 0, kind: input, shape index: {}]
  %s1 = inlined_call_operand.hbm [shape: f32[8,48], index: 1, kind: input, shape index: {}]
  %s2 = inlined_call_operand.hbm [shape: f32[32,512], index: 2, kind: input, shape index: {}]
  %s3 = inlined_call_operand.vmem [shape: f32[1,512], index: 3, kind: input, shape index: {}]
  %s4 = inlined_call_operand.hbm [shape: f32[48,512], index: 4, kind: input, shape index: {}]
  %s5 = inlined_call_operand.vmem [shape: f32[1,512], index: 5, kind: input, shape index: {}]
  %s6 = inlined_call_operand.hbm [shape: f32[256,128], index: 6, kind: input, shape index: {}]
  %s7 = inlined_call_operand.vmem [shape: f32[1,128], index: 7, kind: input, shape index: {}]
  %s8 = inlined_call_operand.hbm [shape: f32[8,128], index: 8, kind: output, shape index: {}]
  %s9 = sld [smem:[#allocation0]]
  $region97: #{tpu_custom_call.1} parent=0
    _
  %s11 = ssub.s32 1, %s9
  %s12 = scalar_select 0, %s11, %s9
  $region1: #{tpu_custom_call.1} parent=0
    #allocation2 [shape = 'u8[4096]{0}', space=vmem, size = 0x1000, scoped, tag = 'input window, operand 0, single buffered']
    #allocation3 [shape = 's32[2]{0}', space=sflag, size = 0x8, scoped, tag = 'scoped memory for tpu_custom_call.1']
    #allocation4 [shape = 's32[2]{0}', space=sflag, size = 0x8, scoped, tag = 'scoped memory for tpu_custom_call.1']
    #allocation5 [shape = 'u8[4096]{0}', space=vmem, size = 0x1000, scoped, tag = 'input window, operand 1, single buffered']
    #allocation6 [shape = 's32[1]{0}', space=sflag, size = 0x4, scoped, tag = 'scoped memory for tpu_custom_call.1']
    #allocation7 [shape = 'u8[65536]{0}', space=vmem, size = 0x10000, scoped, tag = 'input window, operand 2']
    #allocation8 [shape = 'u8[98304]{0}', space=vmem, size = 0x18000, scoped, tag = 'input window, operand 4']
    #allocation9 [shape = 'u8[131072]{0}', space=vmem, size = 0x20000, scoped, tag = 'input window, operand 6']
    #allocation10 [shape = 'u8[4096]{0}', space=vmem, size = 0x1000, scoped, tag = 'output window, operand 0, single buffered']
    %13 = vsyncpa [#allocation3], 0
    %14 = vsyncpa [#allocation6], 0
    %15 = vsyncpa [#allocation4], 0
    loop: start=0, step=1, limit=4
    $region2: #{tpu_custom_call.1} parent=1 // loop_pre_header
      _
    $region3: #{tpu_custom_call.1} parent=1 // loop_header
      %s17 = sphi 0, %s21
      %p18 = scmp.ge.s32.totalorder %s17, 4
      %s24 = sphi 0, %s36
      %s25 = sphi 0, %s32
      %s26 = sphi 0, %s24
      %s27 = sphi 0, %s25
      %s28 = sphi 0, %s26
      %s29 = sphi 0, %s27
      %s39 = sphi 0, %s41
      %s42 = sphi 0, %s39
      %s43 = sphi 0, %s42
      %s59 = sphi 0, %s43
      %s65 = sphi 0, %s67
      %s68 = sphi 0, %s65
      %s69 = sphi 0, %s68
      %s85 = sphi 0, %s69
      %s91 = sphi 0, %s93
      %s94 = sphi 0, %s91
      %s95 = sphi 0, %s94
      %s111 = sphi 0, %s95
      %s115 = sphi 0, %s115
      %s117 = sphi 0, %s115
      %s118 = sphi 0, %s117
      %s132 = sphi 0, %s118
      %s138 = sphi 0, %s140
      %s141 = sphi 0, %s138
      %s142 = sphi 0, %s141
      %s158 = sphi 0, %s142
      %s162 = sphi 0, %s162
      %s164 = sphi 0, %s162
      %s165 = sphi 0, %s164
      %s179 = sphi 0, %s165
      %s185 = sphi 0, %s187
      %s188 = sphi 0, %s185
      %s189 = sphi 0, %s188
      %s205 = sphi 0, %s189
      %s209 = sphi 0, %s209
      %s211 = sphi 0, %s209
      %s212 = sphi 0, %s211
      %s226 = sphi 0, %s212
      %s232 = sphi 0, %s234
      %s235 = sphi 0, %s232
      %s236 = sphi 0, %s235
      %s252 = sphi 0, %s236
    $region4: #{tpu_custom_call.1} parent=1 // loop_header_branch
      %20 = sbr.rel (%p18) target = $region8
    $region5: #{tpu_custom_call.1} parent=1 // loop_body
      %s22 = ssub.s32 %s17, 1
      %s23 = ssub.s32 %s17, 2
      %s30 = sadd.s32 1, %s25
      %p31 = scmp.ge.s32.totalorder %s30, 2
      %s32 = scalar_select %p31, 0, %s30
      %s33 = sadd.s32 1, %s24
      %s34 = scalar_select %p31, %s33, %s24
      %p35 = scmp.ge.s32.totalorder %s34, 1
      %s36 = scalar_select %p35, 0, %s34
      %s37 = ssub.s32 %s24, %s36
      %p38 = scmp.eq.s32.totalorder %s37, 0
      %s40 = sadd.s32 %s39, 1
      %s41 = scalar_select %p38, %s39, %s40
      %p44 = pneg %p38
      %p45 = scmp.eq.s32.totalorder %s17, 1
      %p46 = por %p44, %p45
      %p47 = scmp.ne.s32.totalorder %s39, %s42
      %p48 = scmp.eq.s32.totalorder %s17, 0
      %p49 = por %p47, %p48
      %p50 = scmp.ne.s32.totalorder %s39, %s42
      %p51 = scmp.eq.s32.totalorder %s22, 1
      %p52 = por %p50, %p51
      %p53 = scmp.ne.s32.totalorder %s42, %s43
      %p54 = scmp.eq.s32.totalorder %s22, 0
      %p55 = por %p53, %p54
      %p56 = scmp.ne.s32.totalorder %s42, %s43
      %p57 = scmp.eq.s32.totalorder %s23, 1
      %p58 = por %p56, %p57
      %p60 = scmp.ne.s32.totalorder %s43, %s59
      %p61 = scmp.eq.s32.totalorder %s23, 0
      %p62 = por %p60, %p61
      %s63 = ssub.s32 %s24, %s36
      %p64 = scmp.eq.s32.totalorder %s63, 0
      %s66 = sadd.s32 %s65, 1
      %s67 = scalar_select %p64, %s65, %s66
      %p70 = pneg %p64
      %p71 = scmp.eq.s32.totalorder %s17, 1
      %p72 = por %p70, %p71
      %p73 = scmp.ne.s32.totalorder %s65, %s68
      %p74 = scmp.eq.s32.totalorder %s17, 0
      %p75 = por %p73, %p74
      %p76 = scmp.ne.s32.totalorder %s65, %s68
      %p77 = scmp.eq.s32.totalorder %s22, 1
      %p78 = por %p76, %p77
      %p79 = scmp.ne.s32.totalorder %s68, %s69
      %p80 = scmp.eq.s32.totalorder %s22, 0
      %p81 = por %p79, %p80
      %p82 = scmp.ne.s32.totalorder %s68, %s69
      %p83 = scmp.eq.s32.totalorder %s23, 1
      %p84 = por %p82, %p83
      %p86 = scmp.ne.s32.totalorder %s69, %s85
      %p87 = scmp.eq.s32.totalorder %s23, 0
      %p88 = por %p86, %p87
      %s89 = ssub.s32 %s25, %s32
      %p90 = scmp.eq.s32.totalorder %s89, 0
      %s92 = sadd.s32 %s91, 1
      %s93 = scalar_select %p90, %s91, %s92
      %p96 = pneg %p90
      %p97 = scmp.eq.s32.totalorder %s17, 1
      %p98 = por %p96, %p97
      %p99 = scmp.ne.s32.totalorder %s91, %s94
      %p100 = scmp.eq.s32.totalorder %s17, 0
      %p101 = por %p99, %p100
      %p102 = scmp.ne.s32.totalorder %s91, %s94
      %p103 = scmp.eq.s32.totalorder %s22, 1
      %p104 = por %p102, %p103
      %p105 = scmp.ne.s32.totalorder %s94, %s95
      %p106 = scmp.eq.s32.totalorder %s22, 0
      %p107 = por %p105, %p106
      %p108 = scmp.ne.s32.totalorder %s94, %s95
      %p109 = scmp.eq.s32.totalorder %s23, 1
      %p110 = por %p108, %p109
      %p112 = scmp.ne.s32.totalorder %s95, %s111
      %p113 = scmp.eq.s32.totalorder %s23, 0
      %p114 = por %p112, %p113
      %s116 = sadd.s32 %s115, 1
      %p119 = scmp.eq.s32.totalorder %s17, 1
      %p120 = scmp.ne.s32.totalorder %s115, %s117
      %p121 = scmp.eq.s32.totalorder %s17, 0
      %p122 = por %p120, %p121
      %p123 = scmp.ne.s32.totalorder %s115, %s117
      %p124 = scmp.eq.s32.totalorder %s22, 1
      %p125 = por %p123, %p124
      %p126 = scmp.ne.s32.totalorder %s117, %s118
      %p127 = scmp.eq.s32.totalorder %s22, 0
      %p128 = por %p126, %p127
      %p129 = scmp.ne.s32.totalorder %s117, %s118
      %p130 = scmp.eq.s32.totalorder %s23, 1
      %p131 = por %p129, %p130
      %p133 = scmp.ne.s32.totalorder %s118, %s132
      %p134 = scmp.eq.s32.totalorder %s23, 0
      %p135 = por %p133, %p134
      %s136 = ssub.s32 %s25, %s32
      %p137 = scmp.eq.s32.totalorder %s136, 0
      %s139 = sadd.s32 %s138, 1
      %s140 = scalar_select %p137, %s138, %s139
      %p143 = pneg %p137
      %p144 = scmp.eq.s32.totalorder %s17, 1
      %p145 = por %p143, %p144
      %p146 = scmp.ne.s32.totalorder %s138, %s141
      %p147 = scmp.eq.s32.totalorder %s17, 0
      %p148 = por %p146, %p147
      %p149 = scmp.ne.s32.totalorder %s138, %s141
      %p150 = scmp.eq.s32.totalorder %s22, 1
      %p151 = por %p149, %p150
      %p152 = scmp.ne.s32.totalorder %s141, %s142
      %p153 = scmp.eq.s32.totalorder %s22, 0
      %p154 = por %p152, %p153
      %p155 = scmp.ne.s32.totalorder %s141, %s142
      %p156 = scmp.eq.s32.totalorder %s23, 1
      %p157 = por %p155, %p156
      %p159 = scmp.ne.s32.totalorder %s142, %s158
      %p160 = scmp.eq.s32.totalorder %s23, 0
      %p161 = por %p159, %p160
      %s163 = sadd.s32 %s162, 1
      %p166 = scmp.eq.s32.totalorder %s17, 1
      %p167 = scmp.ne.s32.totalorder %s162, %s164
      %p168 = scmp.eq.s32.totalorder %s17, 0
      %p169 = por %p167, %p168
      %p170 = scmp.ne.s32.totalorder %s162, %s164
      %p171 = scmp.eq.s32.totalorder %s22, 1
      %p172 = por %p170, %p171
      %p173 = scmp.ne.s32.totalorder %s164, %s165
      %p174 = scmp.eq.s32.totalorder %s22, 0
      %p175 = por %p173, %p174
      %p176 = scmp.ne.s32.totalorder %s164, %s165
      %p177 = scmp.eq.s32.totalorder %s23, 1
      %p178 = por %p176, %p177
      %p180 = scmp.ne.s32.totalorder %s165, %s179
      %p181 = scmp.eq.s32.totalorder %s23, 0
      %p182 = por %p180, %p181
      %s183 = ssub.s32 %s25, %s32
      %p184 = scmp.eq.s32.totalorder %s183, 0
      %s186 = sadd.s32 %s185, 1
      %s187 = scalar_select %p184, %s185, %s186
      %p190 = pneg %p184
      %p191 = scmp.eq.s32.totalorder %s17, 1
      %p192 = por %p190, %p191
      %p193 = scmp.ne.s32.totalorder %s185, %s188
      %p194 = scmp.eq.s32.totalorder %s17, 0
      %p195 = por %p193, %p194
      %p196 = scmp.ne.s32.totalorder %s185, %s188
      %p197 = scmp.eq.s32.totalorder %s22, 1
      %p198 = por %p196, %p197
      %p199 = scmp.ne.s32.totalorder %s188, %s189
      %p200 = scmp.eq.s32.totalorder %s22, 0
      %p201 = por %p199, %p200
      %p202 = scmp.ne.s32.totalorder %s188, %s189
      %p203 = scmp.eq.s32.totalorder %s23, 1
      %p204 = por %p202, %p203
      %p206 = scmp.ne.s32.totalorder %s189, %s205
      %p207 = scmp.eq.s32.totalorder %s23, 0
      %p208 = por %p206, %p207
      %s210 = sadd.s32 %s209, 1
      %p213 = scmp.eq.s32.totalorder %s17, 1
      %p214 = scmp.ne.s32.totalorder %s209, %s211
      %p215 = scmp.eq.s32.totalorder %s17, 0
      %p216 = por %p214, %p215
      %p217 = scmp.ne.s32.totalorder %s209, %s211
      %p218 = scmp.eq.s32.totalorder %s22, 1
      %p219 = por %p217, %p218
      %p220 = scmp.ne.s32.totalorder %s211, %s212
      %p221 = scmp.eq.s32.totalorder %s22, 0
      %p222 = por %p220, %p221
      %p223 = scmp.ne.s32.totalorder %s211, %s212
      %p224 = scmp.eq.s32.totalorder %s23, 1
      %p225 = por %p223, %p224
      %p227 = scmp.ne.s32.totalorder %s212, %s226
      %p228 = scmp.eq.s32.totalorder %s23, 0
      %p229 = por %p227, %p228
      %s230 = ssub.s32 %s24, %s36
      %p231 = scmp.eq.s32.totalorder %s230, 0
      %s233 = sadd.s32 %s232, 1
      %s234 = scalar_select %p231, %s232, %s233
      %p237 = pneg %p231
      %p238 = scmp.eq.s32.totalorder %s17, 1
      %p239 = por %p237, %p238
      %p240 = scmp.ne.s32.totalorder %s232, %s235
      %p241 = scmp.eq.s32.totalorder %s17, 0
      %p242 = por %p240, %p241
      %p243 = scmp.ne.s32.totalorder %s232, %s235
      %p244 = scmp.eq.s32.totalorder %s22, 1
      %p245 = por %p243, %p244
      %p246 = scmp.ne.s32.totalorder %s235, %s236
      %p247 = scmp.eq.s32.totalorder %s22, 0
      %p248 = por %p246, %p247
      %p249 = scmp.ne.s32.totalorder %s235, %s236
      %p250 = scmp.eq.s32.totalorder %s23, 1
      %p251 = por %p249, %p250
      %p253 = scmp.ne.s32.totalorder %s236, %s252
      %p254 = scmp.eq.s32.totalorder %s23, 0
      %p255 = por %p253, %p254
      %p256 = scmp.le.s32.totalorder 1, %s17
      %p257 = scmp.lt.s32.totalorder %s17, 3
      %p258 = pnand %p256, %p257
      %p259 = pneg %p258
      // Predicated region
      $region9: #{tpu_custom_call.1} parent=5 // pred_check
        _
      $region10: #{tpu_custom_call.1} parent=5 // pred_check_branch
        %261 = sbr.rel (%p258) target = $region12
      $region11: #{tpu_custom_call.1} parent=5 // pred_region
        %s262 = ssub.s32 %s17, 1
        // Predicated region
        $region13: #{tpu_custom_call.1} parent=11 // pred_check
          %p263 = pneg %p55
        $region14: #{tpu_custom_call.1} parent=11 // pred_check_branch
          %265 = sbr.rel (%p263) target = $region16
        $region15: #{tpu_custom_call.1} parent=11 // pred_region
          %s267 = ssub.s32 128, 128
          %268 = vsyncadd [#allocation3], %s267
          %s269 = smul.addr %s26, 128
          %s270 = scalar_lea.hbm %s0, %s269
          %s272 = sshll.u32 [#allocation2], 4
          %s273 = int_to_ptr.vmem [resolvable:$true] %s272
          %275 = dma.hbm_to_vmem [thread:$0]  %s270, 128, %s273, [#allocation3]
        $region16: #{tpu_custom_call.1} parent=11 // pred_fallthru
          _
        // Predicated region
        $region17: #{tpu_custom_call.1} parent=11 // pred_check
          %p276 = pneg %p81
        $region18: #{tpu_custom_call.1} parent=11 // pred_check_branch
          %278 = sbr.rel (%p276) target = $region20
        $region19: #{tpu_custom_call.1} parent=11 // pred_region
          %s280 = ssub.s32 128, 128
          %281 = vsyncadd [#allocation6], %s280
          %s282 = smul.addr %s26, 128
          %s283 = scalar_lea.hbm %s1, %s282
          %s285 = sshll.u32 [#allocation5], 4
          %s286 = int_to_ptr.vmem [resolvable:$true] %s285
          %288 = dma.hbm_to_vmem [thread:$0]  %s283, 128, %s286, [#allocation6]
        $region20: #{tpu_custom_call.1} parent=11 // pred_fallthru
          _
        // Predicated region
        $region21: #{tpu_custom_call.1} parent=11 // pred_check
          %p289 = pneg %p128
        $region22: #{tpu_custom_call.1} parent=11 // pred_check_branch
          %291 = sbr.rel (%p289) target = $region24
        $region23: #{tpu_custom_call.1} parent=11 // pred_region
          _
        $region24: #{tpu_custom_call.1} parent=11 // pred_fallthru
          _
        // Predicated region
        $region25: #{tpu_custom_call.1} parent=11 // pred_check
          %p292 = pneg %p175
        $region26: #{tpu_custom_call.1} parent=11 // pred_check_branch
          %294 = sbr.rel (%p292) target = $region28
        $region27: #{tpu_custom_call.1} parent=11 // pred_region
          _
        $region28: #{tpu_custom_call.1} parent=11 // pred_fallthru
          _
        // Predicated region
        $region29: #{tpu_custom_call.1} parent=11 // pred_check
          %p295 = pneg %p222
        $region30: #{tpu_custom_call.1} parent=11 // pred_check_branch
          %297 = sbr.rel (%p295) target = $region32
        $region31: #{tpu_custom_call.1} parent=11 // pred_region
          _
        $region32: #{tpu_custom_call.1} parent=11 // pred_fallthru
          _
      $region12: #{tpu_custom_call.1} parent=5 // pred_fallthru
        _
      %p298 = scmp.lt.s32.totalorder %s17, 2
      // Predicated region
      $region33: #{tpu_custom_call.1} parent=5 // pred_check
        %p299 = pneg %p298
      $region34: #{tpu_custom_call.1} parent=5 // pred_check_branch
        %301 = sbr.rel (%p299) target = $region36
      $region35: #{tpu_custom_call.1} parent=5 // pred_region
        // Predicated region
        $region37: #{tpu_custom_call.1} parent=35 // pred_check
          %p302 = pneg %p101
        $region38: #{tpu_custom_call.1} parent=35 // pred_check_branch
          %304 = sbr.rel (%p302) target = $region40
        $region39: #{tpu_custom_call.1} parent=35 // pred_region
          %s305 = sand.u32 %s17, 1
          %s306 = scalar_lea.sflag [#allocation3], %s305
          %s307 = sand.u32 %s91, 1
          %s308 = smul.addr %s307, 64
          %s309 = scalar_lea.vmem [#allocation7], %s308
          %s310 = smul.u32 2, %s25
          %s312 = ssub.s32 1024, 1024
          %313 = vsyncadd %s306, %s312
          %s314 = smul.addr %s310, 128
          %s315 = scalar_lea.hbm %s2, %s314
          %s316 = sshll.u32 %s309, 4
          %s317 = int_to_ptr.vmem [resolvable:$true] %s316
          %322 = dma.hbm_to_vmem [thread:$0]  %s315, 1024, %s317, %s306, 512, 256, 16
        $region40: #{tpu_custom_call.1} parent=35 // pred_fallthru
          _
        // Predicated region
        $region41: #{tpu_custom_call.1} parent=35 // pred_check
          %p323 = pneg %p148
        $region42: #{tpu_custom_call.1} parent=35 // pred_check_branch
          %325 = sbr.rel (%p323) target = $region44
        $region43: #{tpu_custom_call.1} parent=35 // pred_region
          %s326 = sand.u32 %s17, 1
          %s327 = scalar_lea.sflag [#allocation3], %s326
          %s328 = sand.u32 %s138, 1
          %s329 = smul.addr %s328, 96
          %s330 = scalar_lea.vmem [#allocation8], %s329
          %s331 = smul.u32 2, %s25
          %s333 = ssub.s32 1536, 1536
          %334 = vsyncadd %s327, %s333
          %s335 = smul.addr %s331, 128
          %s336 = scalar_lea.hbm %s4, %s335
          %s337 = sshll.u32 %s330, 4
          %s338 = int_to_ptr.vmem [resolvable:$true] %s337
          %343 = dma.hbm_to_vmem [thread:$0]  %s336, 1536, %s338, %s327, 512, 256, 16
        $region44: #{tpu_custom_call.1} parent=35 // pred_fallthru
          _
        // Predicated region
        $region45: #{tpu_custom_call.1} parent=35 // pred_check
          %p344 = pneg %p195
        $region46: #{tpu_custom_call.1} parent=35 // pred_check_branch
          %346 = sbr.rel (%p344) target = $region48
        $region47: #{tpu_custom_call.1} parent=35 // pred_region
          %s347 = sand.u32 %s17, 1
          %s348 = scalar_lea.sflag [#allocation3], %s347
          %s349 = sand.u32 %s185, 1
          %s350 = smul.addr %s349, 128
          %s351 = scalar_lea.vmem [#allocation9], %s350
          %s352 = smul.u32 16, %s25
          %s354 = ssub.s32 2048, 2048
          %355 = vsyncadd %s348, %s354
          %s356 = smul.addr %s352, 128
          %s357 = scalar_lea.hbm %s6, %s356
          %s358 = sshll.u32 %s351, 4
          %s359 = int_to_ptr.vmem [resolvable:$true] %s358
          %364 = dma.hbm_to_vmem [thread:$0]  %s357, 2048, %s359, %s348, 128, 128, 8
        $region48: #{tpu_custom_call.1} parent=35 // pred_fallthru
          _
      $region36: #{tpu_custom_call.1} parent=5 // pred_fallthru
        _
      %p365 = scmp.le.s32.totalorder 1, %s17
      %p366 = scmp.lt.s32.totalorder %s17, 3
      %p367 = pnand %p365, %p366
      %p368 = pneg %p367
      // Predicated region
      $region49: #{tpu_custom_call.1} parent=5 // pred_check
        _
      $region50: #{tpu_custom_call.1} parent=5 // pred_check_branch
        %370 = sbr.rel (%p367) target = $region52
      $region51: #{tpu_custom_call.1} parent=5 // pred_region
        %s371 = ssub.s32 %s17, 1
        // Predicated region
        $region53: #{tpu_custom_call.1} parent=51 // pred_check
          %p372 = pneg %p55
        $region54: #{tpu_custom_call.1} parent=51 // pred_check_branch
          %374 = sbr.rel (%p372) target = $region56
        $region55: #{tpu_custom_call.1} parent=51 // pred_region
          %375 = dma.done [#allocation3], 128
        $region56: #{tpu_custom_call.1} parent=51 // pred_fallthru
          _
        // Predicated region
        $region57: #{tpu_custom_call.1} parent=51 // pred_check
          %p376 = pneg %p81
        $region58: #{tpu_custom_call.1} parent=51 // pred_check_branch
          %378 = sbr.rel (%p376) target = $region60
        $region59: #{tpu_custom_call.1} parent=51 // pred_region
          %379 = dma.done [#allocation6], 128
        $region60: #{tpu_custom_call.1} parent=51 // pred_fallthru
          _
        %s380 = sand.u32 %s22, 1
        %s381 = scalar_lea.sflag [#allocation3], %s380
        %s382 = sand.u32 %s94, 1
        %s383 = smul.addr %s382, 64
        %s384 = scalar_lea.vmem [#allocation7], %s383
        // Predicated region
        $region61: #{tpu_custom_call.1} parent=51 // pred_check
          %p385 = pneg %p107
        $region62: #{tpu_custom_call.1} parent=51 // pred_check_branch
          %387 = sbr.rel (%p385) target = $region64
        $region63: #{tpu_custom_call.1} parent=51 // pred_region
          %388 = dma.done %s381, 1024
        $region64: #{tpu_custom_call.1} parent=51 // pred_fallthru
          _
        %s389 = sand.u32 %s22, 1
        %s390 = scalar_lea.sflag [#allocation3], %s389
        %s391 = sand.u32 %s141, 1
        %s392 = smul.addr %s391, 96
        %s393 = scalar_lea.vmem [#allocation8], %s392
        // Predicated region
        $region65: #{tpu_custom_call.1} parent=51 // pred_check
          %p394 = pneg %p154
        $region66: #{tpu_custom_call.1} parent=51 // pred_check_branch
          %396 = sbr.rel (%p394) target = $region68
        $region67: #{tpu_custom_call.1} parent=51 // pred_region
          %397 = dma.done %s390, 1536
        $region68: #{tpu_custom_call.1} parent=51 // pred_fallthru
          _
        %s398 = sand.u32 %s22, 1
        %s399 = scalar_lea.sflag [#allocation3], %s398
        %s400 = sand.u32 %s188, 1
        %s401 = smul.addr %s400, 128
        %s402 = scalar_lea.vmem [#allocation9], %s401
        // Predicated region
        $region69: #{tpu_custom_call.1} parent=51 // pred_check
          %p403 = pneg %p201
        $region70: #{tpu_custom_call.1} parent=51 // pred_check_branch
          %405 = sbr.rel (%p403) target = $region72
        $region71: #{tpu_custom_call.1} parent=51 // pred_region
          %406 = dma.done %s399, 2048
        $region72: #{tpu_custom_call.1} parent=51 // pred_fallthru
          _
        %p407 = pneg %p55
        %p408 = pneg %p52
        %p409 = pneg %p81
        %p410 = pneg %p78
        %s411 = sand.u32 %s22, 1
        %s412 = scalar_lea.sflag [#allocation3], %s411
        %s413 = sand.u32 %s94, 1
        %s414 = smul.addr %s413, 64
        %s415 = scalar_lea.vmem [#allocation7], %s414
        %p416 = pneg %p107
        %p417 = pneg %p104
        %p418 = pneg %p128
        %p419 = pneg %p125
        %s420 = sand.u32 %s22, 1
        %s421 = scalar_lea.sflag [#allocation3], %s420
        %s422 = sand.u32 %s141, 1
        %s423 = smul.addr %s422, 96
        %s424 = scalar_lea.vmem [#allocation8], %s423
        %p425 = pneg %p154
        %p426 = pneg %p151
        %p427 = pneg %p175
        %p428 = pneg %p172
        %s429 = sand.u32 %s22, 1
        %s430 = scalar_lea.sflag [#allocation3], %s429
        %s431 = sand.u32 %s188, 1
        %s432 = smul.addr %s431, 128
        %s433 = scalar_lea.vmem [#allocation9], %s432
        %p434 = pneg %p201
        %p435 = pneg %p198
        %p436 = pneg %p222
        %p437 = pneg %p219
        %p438 = pneg %p248
        %p439 = pneg %p245
        %s440 = smul.u32 2, %s27
        %s441 = smul.u32 2, %s27
        %s442 = smul.u32 16, %s27
        %s443 = smul.u32 %s27, 256
        %s444 = sshra.s32 %s443, 7
        %s445 = sand.u32 %s443, 127
        %s446 = scalar_lea.vmem %s3, %s444
        %v447 = vld [vmem:[%s446] sm:$0x3]
        %s448 = scalar_lea.vmem %s5, %s444
        %v449 = vld [vmem:[%s448] sm:$0x3]
        %v450 = vld [vmem:[#allocation2] sm:$0xff]
        %v451 = vld [vmem:[%s384] sm:$0xff]
        %v452 = vld [vmem:[%s384 + $0x8] sm:$0xff]
        %v453 = vld [vmem:[%s384 + $0x10] sm:$0xff]
        %v454 = vld [vmem:[%s384 + $0x18] sm:$0xff]
        %v455 = vld [vmem:[%s384 + $0x20] sm:$0xff]
        %v456 = vld [vmem:[%s384 + $0x28] sm:$0xff]
        %v457 = vld [vmem:[%s384 + $0x30] sm:$0xff]
        %v458 = vld [vmem:[%s384 + $0x38] sm:$0xff]
        %v460 = vlaneseq
        %v461 = vshrl.u32 %v460, 7
        %v462 = vsub.s32 0, %v461
        %v463 = vrot.slane %v447, %v462
        %v464 = vlaneseq
        %v465 = vshrl.u32 %v464, 7
        %v466 = vsub.s32 1, %v465
        %v467 = vrot.slane %v447, %v466
        %vm470 = vcmask 261120
        %v472 = vsel %vm470, %v450, 0
        %474 = vmatprep.subr.mxu0 0.0
        %475 = vmatpush1.msra.mxu0 0.0
        %476 = vmatprep.subr.mxu0 0.0
        %477 = vmatpush1.msra.mxu0 0.0
        %478 = vmatprep.subr.mxu0 0.0
        %479 = vmatpush1.msra.mxu0 0.0
        %480 = vmatprep.subr.mxu0 0.0
        %481 = vmatpush1.msra.mxu0 0.0
        %482 = vmatprep.subr.mxu0 0.0
        %483 = vmatpush1.msra.mxu0 0.0
        %484 = vmatprep.subr.mxu0 0.0
        %485 = vmatpush1.msra.mxu0 0.0
        %486 = vmatprep.subr.mxu0 0.0
        %487 = vmatpush1.msra.mxu0 0.0
        %488 = vmatprep.subr.mxu0 0.0
        %489 = vmatpush1.msra.mxu0 0.0
        %490 = vmatprep.subr.mxu0 0.0
        %491 = vmatpush1.msra.mxu0 0.0
        %492 = vmatprep.subr.mxu0 0.0
        %493 = vmatpush1.msra.mxu0 0.0
        %494 = vmatprep.subr.mxu0 0.0
        %495 = vmatpush1.msra.mxu0 0.0
        %496 = vmatprep.subr.mxu0 0.0
        %497 = vmatpush1.msra.mxu0 0.0
        %498 = vmatprep.subr.mxu0 %v458
        %499 = vmatpush1.msra.mxu0 %v457
        %500 = vmatprep.subr.mxu0 %v456
        %501 = vmatpush1.msra.mxu0 %v455
        %502 = vmatprep.subr.mxu0 %v454
        %503 = vmatpush1.msra.mxu0 %v453
        %504 = vmatprep.subr.mxu0 %v452
        %505 = vmatpush1.msra.mxu0 %v451
        %506 = vmatprep.subr.mxu0 0.0
        %507 = vmatpush2.msra.mxu0 0.0
        %508 = vmatprep.subr.mxu0 0.0
        %509 = vmatpush2.msra.mxu0 0.0
        %510 = vmatprep.subr.mxu0 0.0
        %511 = vmatpush2.msra.mxu0 0.0
        %512 = vmatprep.subr.mxu0 0.0
        %513 = vmatpush2.msra.mxu0 0.0
        %514 = vmatprep.subr.mxu0 0.0
        %515 = vmatpush2.msra.mxu0 0.0
        %516 = vmatprep.subr.mxu0 0.0
        %517 = vmatpush2.msra.mxu0 0.0
        %518 = vmatprep.subr.mxu0 0.0
        %519 = vmatpush2.msra.mxu0 0.0
        %520 = vmatprep.subr.mxu0 0.0
        %521 = vmatpush2.msra.mxu0 0.0
        %522 = vmatprep.subr.mxu0 0.0
        %523 = vmatpush2.msra.mxu0 0.0
        %524 = vmatprep.subr.mxu0 0.0
        %525 = vmatpush2.msra.mxu0 0.0
        %526 = vmatprep.subr.mxu0 0.0
        %527 = vmatpush2.msra.mxu0 0.0
        %528 = vmatprep.subr.mxu0 0.0
        %529 = vmatpush2.msra.mxu0 0.0
        %530 = vmatprep.subr.mxu0 0.0
        %531 = vmatpush2.msra.mxu0 0.0
        %532 = vmatprep.subr.mxu0 0.0
        %533 = vmatpush2.msra.mxu0 0.0
        %534 = vmatprep.subr.mxu0 0.0
        %535 = vmatpush2.msra.mxu0 0.0
        %536 = vmatprep.subr.mxu0 0.0
        %537 = vmatpush2.msra.mxu0 0.0
        %538 = vmatprep.mubr.f32.mxu0 0.0
        %539 = vmatmul.mubr.f32.gmra.mxu0 %v472
        %v540 = vpop.f32.mrf.mxu0
        %v541 = vadd.f32 %v463, %v540
        %v542 = vpop.f32.mrf.mxu0
        %v543 = vadd.f32 %v467, %v542
        %544 = vdwg.mxu0
        %v545 = vmax.f32 %v541, 0.0
        %v546 = vmax.f32 %v543, 0.0
        %v547 = vld [vmem:[#allocation5] sm:$0xff]
        %v548 = vld [vmem:[%s393] sm:$0xff]
        %v549 = vld [vmem:[%s393 + $0x8] sm:$0xff]
        %v550 = vld [vmem:[%s393 + $0x10] sm:$0xff]
        %v551 = vld [vmem:[%s393 + $0x18] sm:$0xff]
        %v552 = vld [vmem:[%s393 + $0x20] sm:$0xff]
        %v553 = vld [vmem:[%s393 + $0x28] sm:$0xff]
        %v554 = vld [vmem:[%s393 + $0x30] sm:$0xff]
        %v555 = vld [vmem:[%s393 + $0x38] sm:$0xff]
        %v556 = vld [vmem:[%s393 + $0x40] sm:$0xff]
        %v557 = vld [vmem:[%s393 + $0x48] sm:$0xff]
        %v558 = vld [vmem:[%s393 + $0x50] sm:$0xff]
        %v559 = vld [vmem:[%s393 + $0x58] sm:$0xff]
        %v561 = vlaneseq
        %v562 = vshrl.u32 %v561, 7
        %v563 = vsub.s32 0, %v562
        %v564 = vrot.slane %v449, %v563
        %v565 = vlaneseq
        %v566 = vshrl.u32 %v565, 7
        %v567 = vsub.s32 1, %v566
        %v568 = vrot.slane %v449, %v567
        %vm571 = vcmask 392192
        %v573 = vsel %vm571, %v547, 0
        %575 = vmatprep.subr.mxu0 0.0
        %576 = vmatpush1.msra.mxu0 0.0
        %577 = vmatprep.subr.mxu0 0.0
        %578 = vmatpush1.msra.mxu0 0.0
        %579 = vmatprep.subr.mxu0 0.0
        %580 = vmatpush1.msra.mxu0 0.0
        %581 = vmatprep.subr.mxu0 0.0
        %582 = vmatpush1.msra.mxu0 0.0
        %583 = vmatprep.subr.mxu0 0.0
        %584 = vmatpush1.msra.mxu0 0.0
        %585 = vmatprep.subr.mxu0 0.0
        %586 = vmatpush1.msra.mxu0 0.0
        %587 = vmatprep.subr.mxu0 0.0
        %588 = vmatpush1.msra.mxu0 0.0
        %589 = vmatprep.subr.mxu0 0.0
        %590 = vmatpush1.msra.mxu0 0.0
        %591 = vmatprep.subr.mxu0 0.0
        %592 = vmatpush1.msra.mxu0 0.0
        %593 = vmatprep.subr.mxu0 0.0
        %594 = vmatpush1.msra.mxu0 0.0
        %595 = vmatprep.subr.mxu0 %v559
        %596 = vmatpush1.msra.mxu0 %v558
        %597 = vmatprep.subr.mxu0 %v557
        %598 = vmatpush1.msra.mxu0 %v556
        %599 = vmatprep.subr.mxu0 %v555
        %600 = vmatpush1.msra.mxu0 %v554
        %601 = vmatprep.subr.mxu0 %v553
        %602 = vmatpush1.msra.mxu0 %v552
        %603 = vmatprep.subr.mxu0 %v551
        %604 = vmatpush1.msra.mxu0 %v550
        %605 = vmatprep.subr.mxu0 %v549
        %606 = vmatpush1.msra.mxu0 %v548
        %607 = vmatprep.subr.mxu0 0.0
        %608 = vmatpush2.msra.mxu0 0.0
        %609 = vmatprep.subr.mxu0 0.0
        %610 = vmatpush2.msra.mxu0 0.0
        %611 = vmatprep.subr.mxu0 0.0
        %612 = vmatpush2.msra.mxu0 0.0
        %613 = vmatprep.subr.mxu0 0.0
        %614 = vmatpush2.msra.mxu0 0.0
        %615 = vmatprep.subr.mxu0 0.0
        %616 = vmatpush2.msra.mxu0 0.0
        %617 = vmatprep.subr.mxu0 0.0
        %618 = vmatpush2.msra.mxu0 0.0
        %619 = vmatprep.subr.mxu0 0.0
        %620 = vmatpush2.msra.mxu0 0.0
        %621 = vmatprep.subr.mxu0 0.0
        %622 = vmatpush2.msra.mxu0 0.0
        %623 = vmatprep.subr.mxu0 0.0
        %624 = vmatpush2.msra.mxu0 0.0
        %625 = vmatprep.subr.mxu0 0.0
        %626 = vmatpush2.msra.mxu0 0.0
        %627 = vmatprep.subr.mxu0 0.0
        %628 = vmatpush2.msra.mxu0 0.0
        %629 = vmatprep.subr.mxu0 0.0
        %630 = vmatpush2.msra.mxu0 0.0
        %631 = vmatprep.subr.mxu0 0.0
        %632 = vmatpush2.msra.mxu0 0.0
        %633 = vmatprep.subr.mxu0 0.0
        %634 = vmatpush2.msra.mxu0 0.0
        %635 = vmatprep.subr.mxu0 0.0
        %636 = vmatpush2.msra.mxu0 0.0
        %637 = vmatprep.subr.mxu0 0.0
        %638 = vmatpush2.msra.mxu0 0.0
        %639 = vmatprep.mubr.f32.mxu0 0.0
        %640 = vmatmul.mubr.f32.gmra.mxu0 %v573
        %v641 = vpop.f32.mrf.mxu0
        %v642 = vadd.f32 %v564, %v641
        %v643 = vpop.f32.mrf.mxu0
        %v644 = vadd.f32 %v568, %v643
        %645 = vdwg.mxu0
        %v646 = vmax.f32 %v642, 0.0
        %v647 = vmax.f32 %v644, 0.0
        %v648 = vmul.f32 %v545, %v646
        %v649 = vmul.f32 %v546, %v647
        %v650 = vadd.f32 %v648, %v649
        %v651 = vld [vmem:[%s402] sm:$0xff]
        %v652 = vld [vmem:[%s402 + $0x8] sm:$0xff]
        %v653 = vld [vmem:[%s402 + $0x10] sm:$0xff]
        %v654 = vld [vmem:[%s402 + $0x18] sm:$0xff]
        %v655 = vld [vmem:[%s402 + $0x20] sm:$0xff]
        %v656 = vld [vmem:[%s402 + $0x28] sm:$0xff]
        %v657 = vld [vmem:[%s402 + $0x30] sm:$0xff]
        %v658 = vld [vmem:[%s402 + $0x38] sm:$0xff]
        %v659 = vld [vmem:[%s402 + $0x40] sm:$0xff]
        %v660 = vld [vmem:[%s402 + $0x48] sm:$0xff]
        %v661 = vld [vmem:[%s402 + $0x50] sm:$0xff]
        %v662 = vld [vmem:[%s402 + $0x58] sm:$0xff]
        %v663 = vld [vmem:[%s402 + $0x60] sm:$0xff]
        %v664 = vld [vmem:[%s402 + $0x68] sm:$0xff]
        %v665 = vld [vmem:[%s402 + $0x70] sm:$0xff]
        %v666 = vld [vmem:[%s402 + $0x78] sm:$0xff]
        %667 = vmatprep.subr.mxu0 0.0
        %668 = vmatpush1.msra.mxu0 %v666
        %669 = vmatprep.subr.mxu0 0.0
        %670 = vmatpush1.msra.mxu0 %v665
        %671 = vmatprep.subr.mxu0 0.0
        %672 = vmatpush1.msra.mxu0 %v664
        %673 = vmatprep.subr.mxu0 0.0
        %674 = vmatpush1.msra.mxu0 %v663
        %675 = vmatprep.subr.mxu0 0.0
        %676 = vmatpush1.msra.mxu0 %v662
        %677 = vmatprep.subr.mxu0 0.0
        %678 = vmatpush1.msra.mxu0 %v661
        %679 = vmatprep.subr.mxu0 0.0
        %680 = vmatpush1.msra.mxu0 %v660
        %681 = vmatprep.subr.mxu0 0.0
        %682 = vmatpush1.msra.mxu0 %v659
        %683 = vmatprep.subr.mxu0 0.0
        %684 = vmatpush1.msra.mxu0 %v658
        %685 = vmatprep.subr.mxu0 0.0
        %686 = vmatpush1.msra.mxu0 %v657
        %687 = vmatprep.subr.mxu0 0.0
        %688 = vmatpush1.msra.mxu0 %v656
        %689 = vmatprep.subr.mxu0 0.0
        %690 = vmatpush1.msra.mxu0 %v655
        %691 = vmatprep.subr.mxu0 0.0
        %692 = vmatpush1.msra.mxu0 %v654
        %693 = vmatprep.subr.mxu0 0.0
        %694 = vmatpush1.msra.mxu0 %v653
        %695 = vmatprep.subr.mxu0 0.0
        %696 = vmatpush1.msra.mxu0 %v652
        %697 = vmatprep.subr.mxu0 0.0
        %698 = vmatpush1.msra.mxu0 %v651
        %699 = vmatprep.subr.mxu0 0.0
        %700 = vmatpush2.msra.mxu0 0.0
        %701 = vmatprep.subr.mxu0 0.0
        %702 = vmatpush2.msra.mxu0 0.0
        %703 = vmatprep.subr.mxu0 0.0
        %704 = vmatpush2.msra.mxu0 0.0
        %705 = vmatprep.subr.mxu0 0.0
        %706 = vmatpush2.msra.mxu0 0.0
        %707 = vmatprep.subr.mxu0 0.0
        %708 = vmatpush2.msra.mxu0 0.0
        %709 = vmatprep.subr.mxu0 0.0
        %710 = vmatpush2.msra.mxu0 0.0
        %711 = vmatprep.subr.mxu0 0.0
        %712 = vmatpush2.msra.mxu0 0.0
        %713 = vmatprep.subr.mxu0 0.0
        %714 = vmatpush2.msra.mxu0 0.0
        %715 = vmatprep.subr.mxu0 0.0
        %716 = vmatpush2.msra.mxu0 0.0
        %717 = vmatprep.subr.mxu0 0.0
        %718 = vmatpush2.msra.mxu0 0.0
        %719 = vmatprep.subr.mxu0 0.0
        %720 = vmatpush2.msra.mxu0 0.0
        %721 = vmatprep.subr.mxu0 0.0
        %722 = vmatpush2.msra.mxu0 0.0
        %723 = vmatprep.subr.mxu0 0.0
        %724 = vmatpush2.msra.mxu0 0.0
        %725 = vmatprep.subr.mxu0 0.0
        %726 = vmatpush2.msra.mxu0 0.0
        %727 = vmatprep.subr.mxu0 0.0
        %728 = vmatpush2.msra.mxu0 0.0
        %729 = vmatprep.subr.mxu0 0.0
        %730 = vmatpush2.msra.mxu0 0.0
        %731 = vmatprep.mubr.f32.mxu0 0.0
        %732 = vmatmul.mubr.f32.gmra.mxu0 %v650
        %v733 = vpop.f32.mrf.mxu0
        %v734 = vadd.f32 0.0, %v733
        %v735 = vpop.f32.mrf.mxu0
        %736 = vdwg.mxu0
        %p737 = scmp.eq.s32.totalorder %s27, 0
        // Predicated region
        $region73: #{tpu_custom_call.1} parent=51 // pred_check
          %p738 = pneg %p737
        $region74: #{tpu_custom_call.1} parent=51 // pred_check_branch
          %740 = sbr.rel (%p738) target = $region76
        $region75: #{tpu_custom_call.1} parent=51 // pred_region
          %741 = vst [vmem:[#allocation10] sm:$0xff] %v734
        $region76: #{tpu_custom_call.1} parent=51 // pred_fallthru
          _
        %p742 = scmp.ne.s32.totalorder %s27, 0
        // Predicated region
        $region77: #{tpu_custom_call.1} parent=51 // pred_check
          %p743 = pneg %p742
        $region78: #{tpu_custom_call.1} parent=51 // pred_check_branch
          %745 = sbr.rel (%p743) target = $region80
        $region79: #{tpu_custom_call.1} parent=51 // pred_region
          %v746 = vld [vmem:[#allocation10] sm:$0xff]
          %v747 = vadd.f32 %v746, %v734
          %748 = vst [vmem:[#allocation10] sm:$0xff] %v747
        $region80: #{tpu_custom_call.1} parent=51 // pred_fallthru
          _
        %p749 = scmp.eq.s32.totalorder %s27, 1
        // Predicated region
        $region81: #{tpu_custom_call.1} parent=51 // pred_check
          %p750 = pneg %p749
        $region82: #{tpu_custom_call.1} parent=51 // pred_check_branch
          %752 = sbr.rel (%p750) target = $region84
        $region83: #{tpu_custom_call.1} parent=51 // pred_region
          %v753 = vld [vmem:[#allocation10] sm:$0xff]
          %v754 = vld [vmem:[%s7] sm:$0x1]
          %v756 = vlaneseq
          %v757 = vshrl.u32 %v756, 7
          %v758 = vsub.s32 0, %v757
          %v759 = vrot.slane %v754, %v758
          %v761 = vadd.f32 %v753, %v759
          %v762 = vmax.f32 %v761, 0.0
          %763 = vst [vmem:[#allocation10] sm:$0xff] %v762
        $region84: #{tpu_custom_call.1} parent=51 // pred_fallthru
          _
        // Predicated region
        $region85: #{tpu_custom_call.1} parent=51 // pred_check
          %p764 = pneg %p245
        $region86: #{tpu_custom_call.1} parent=51 // pred_check_branch
          %766 = sbr.rel (%p764) target = $region88
        $region87: #{tpu_custom_call.1} parent=51 // pred_region
          %s768 = ssub.s32 128, 128
          %769 = vsyncadd [#allocation4], %s768
          %s770 = smul.addr %s26, 128
          %s771 = scalar_lea.hbm %s8, %s770
          %s773 = sshll.u32 [#allocation10], 4
          %s774 = int_to_ptr.vmem [resolvable:$true] %s773
          %776 = dma.vmem_to_hbm [thread:$0]  %s774, 128, %s771, [#allocation4]
        $region88: #{tpu_custom_call.1} parent=51 // pred_fallthru
          _
        // Predicated region
        $region89: #{tpu_custom_call.1} parent=51 // pred_check
          %p777 = pneg %p245
        $region90: #{tpu_custom_call.1} parent=51 // pred_check_branch
          %779 = sbr.rel (%p777) target = $region92
        $region91: #{tpu_custom_call.1} parent=51 // pred_region
          %780 = dma.done [#allocation4], 128
        $region92: #{tpu_custom_call.1} parent=51 // pred_fallthru
          _
      $region52: #{tpu_custom_call.1} parent=5 // pred_fallthru
        _
      %p781 = scmp.le.s32.totalorder 2, %s17
      // Predicated region
      $region93: #{tpu_custom_call.1} parent=5 // pred_check
        %p782 = pneg %p781
      $region94: #{tpu_custom_call.1} parent=5 // pred_check_branch
        %784 = sbr.rel (%p782) target = $region96
      $region95: #{tpu_custom_call.1} parent=5 // pred_region
        %s785 = ssub.s32 %s17, 2
      $region96: #{tpu_custom_call.1} parent=5 // pred_fallthru
        _
    $region6: #{tpu_custom_call.1} parent=1 // loop_footer
      %s21 = sadd.s32 1, %s17
    $region7: #{tpu_custom_call.1} parent=1 // loop_footer_branch
      %16 = sbr.rel target = $region3
    $region8: #{tpu_custom_call.1} parent=1 // loop_exit
      _
    %786 = vsyncpa [#allocation3], 1
    %s787 = scalar_lea.sflag [#allocation3], 1
    %788 = vsyncpa %s787, 1
    %789 = vsyncpa [#allocation6], 1
    %790 = vsyncpa [#allocation4], 1
    %s791 = scalar_lea.sflag [#allocation4], 1
    %792 = vsyncpa %s791, 1

</llo_original>
